<compile_context>
chip_gen: v7x
topology: tpu7x:2x2x1
jax: 0.10.0
libtpu: 0.0.40
codegen_flags: <defaults>
</compile_context>

<pallas_src>
import functools

import jax
import jax.numpy as jnp
from jax.experimental import pallas as pl
from jax.experimental.pallas import tpu as pltpu


MAX_TILE_ROWS = 1024      # ~23 MiB live (double-buffered) at LANE=512
TARGET_GRID_STEPS = 8     # keep the grid >= 2 (ideally 4+) steps when possible
LANE_CANDIDATES = (512, 256, 128)


def _elementwise_kernel(x_ref, add_ref, sub_ref, mul_ref, div_ref,
                        gt_ref, lt_ref, eq_ref):
    x = x_ref[...]
    add_ref[...] = x + 2.0
    sub_ref[...] = x - 2.0
    mul_ref[...] = x * 2.0
    div_ref[...] = x * 0.5                        # bit-exact f32 equivalent of x / 2
    gt_ref[...] = (x > 1.0).astype(gt_ref.dtype)
    lt_ref[...] = (x < 1.0).astype(lt_ref.dtype)
    eq_ref[...] = (x == 1.0).astype(eq_ref.dtype)


def _choose_layout(n):
    """Lane-dense (rows, lane) view of a length-n flat array; pad only if forced."""
    for lane in LANE_CANDIDATES:
        if n % lane == 0:
            return n // lane, lane, 0
    lane = 128
    rows = -(-n // lane)
    return rows, lane, rows * lane - n


def _choose_tile_rows(rows):
    if rows <= 8:
        return rows                               # single full-extent block
    tr = -(-rows // TARGET_GRID_STEPS)            # aim for >= TARGET_GRID_STEPS steps
    tr = -(-tr // 8) * 8                          # sublane-aligned
    return max(8, min(tr, MAX_TILE_ROWS))


@functools.partial(jax.jit, static_argnames=("bool_masks",))
def _forward(x, bool_masks):
    orig_shape = x.shape
    n = x.size
    rows, lane, pad = _choose_layout(n)

    x_flat = x.reshape(-1)
    if pad:
        # TODO(synk): padding path only taken when numel is not a multiple of 128.
        x_flat = jnp.pad(x_flat, (0, pad))
    x2d = x_flat.reshape(rows, lane)

    tile_r = _choose_tile_rows(rows)
    grid = (pl.cdiv(rows, tile_r),)

    mask_dtype = jnp.bool_ if bool_masks else jnp.int8
    f32 = jax.ShapeDtypeStruct((rows, lane), jnp.float32)
    msk = jax.ShapeDtypeStruct((rows, lane), mask_dtype)
    spec = pl.BlockSpec((tile_r, lane), lambda i: (i, 0))

    add, sub, mul, div, gt, lt, eq = pl.pallas_call(
        _elementwise_kernel,
        out_shape=(f32, f32, f32, f32, msk, msk, msk),
        grid=grid,
        in_specs=[spec],
        out_specs=(spec,) * 7,
        compiler_params=pltpu.CompilerParams(
            dimension_semantics=("parallel",),
            vmem_limit_bytes=32 << 20),
        cost_estimate=pl.CostEstimate(
            flops=7 * n, transcendentals=0, bytes_accessed=23 * n),
    )(x2d)

    def unflatten(a, to_bool=False):
        if pad:
            a = a.reshape(-1)[:n]
        a = a.reshape(orig_shape)
        if to_bool and a.dtype != jnp.bool_:
            a = a.astype(jnp.bool_)
        return a

    return {
        'addition': unflatten(add),
        'subtraction': unflatten(sub),
        'multiplication': unflatten(mul),
        'division': unflatten(div),
        'greater_than': unflatten(gt, to_bool=True),
        'less_than': unflatten(lt, to_bool=True),
        'equal_to': unflatten(eq, to_bool=True),
    }


_BOOL_MASKS_OK = None   # resolved on first call


def pt_module_forward(x):
    """x: float32 array (any shape). Returns dict matching PtModule.forward."""
    global _BOOL_MASKS_OK
    if _BOOL_MASKS_OK is None:
        try:
            out = _forward(x, bool_masks=True)
            jax.block_until_ready(out)
            _BOOL_MASKS_OK = True
            return out
        except Exception:
            _BOOL_MASKS_OK = False   # Mosaic build without bool-ref support
    return _forward(x, bool_masks=_BOOL_MASKS_OK)


if __name__ == "__main__":
    key = jax.random.PRNGKey(0)
    x = jax.random.normal(key, (2, 4, 16, 16), dtype=jnp.float32)
    x = x.at[0, 0, 0, 0].set(1.0)   # make sure the == 1 branch is exercised

    result = pt_module_forward(x)
    jax.block_until_ready(result)

    # lightweight correctness check against pure-JAX reference
    ref = {
        'addition': x + 2,
        'subtraction': x - 2,
        'multiplication': x * 2,
        'division': x / 2,
        'greater_than': x > 1,
        'less_than': x < 1,
        'equal_to': x == 1,
    }
    for k in ref:
        assert result[k].dtype == ref[k].dtype, k
        assert result[k].shape == ref[k].shape, k
        assert jnp.array_equal(result[k], ref[k]), k

    print("KERNEL_OK")
</pallas_src>

<mosaic_0001>
module attributes {stable_mosaic.version = 11 : i64} {
  func.func @_elementwise_kernel(%arg0: i32, %arg1: memref<4x512xf32, #tpu.memory_space<vmem>>, %arg2: memref<4x512xf32, #tpu.memory_space<vmem>>, %arg3: memref<4x512xf32, #tpu.memory_space<vmem>>, %arg4: memref<4x512xf32, #tpu.memory_space<vmem>>, %arg5: memref<4x512xf32, #tpu.memory_space<vmem>>, %arg6: memref<4x512xi32, #tpu.memory_space<vmem>>, %arg7: memref<4x512xi32, #tpu.memory_space<vmem>>, %arg8: memref<4x512xi32, #tpu.memory_space<vmem>>) attributes {dimension_semantics = [#tpu.dimension_semantics<parallel>], iteration_bounds = array<i64: 1>, scalar_prefetch = 0 : i64, scratch_operands = 0 : i64, tpu.core_type = #tpu.core_type<tc>, window_params = [{transform_indices = @transform_0, window_bounds = array<i64: 4, 512>}, {transform_indices = @transform_1, window_bounds = array<i64: 4, 512>}, {transform_indices = @transform_2, window_bounds = array<i64: 4, 512>}, {transform_indices = @transform_3, window_bounds = array<i64: 4, 512>}, {transform_indices = @transform_4, window_bounds = array<i64: 4, 512>}, {transform_indices = @transform_5, window_bounds = array<i64: 4, 512>}, {transform_indices = @transform_6, window_bounds = array<i64: 4, 512>}, {transform_indices = @transform_7, window_bounds = array<i64: 4, 512>}]} {
    %c0 = arith.constant 0 : index
    %c0_0 = arith.constant 0 : index
    %0 = vector.load %arg1[%c0, %c0_0] : memref<4x512xf32, #tpu.memory_space<vmem>>, vector<4x512xf32>
    %cst = arith.constant 2.000000e+00 : f32
    %1 = vector.broadcast %cst : f32 to vector<4x512xf32>
    %2 = arith.addf %0, %1 : vector<4x512xf32>
    %c0_1 = arith.constant 0 : index
    %c0_2 = arith.constant 0 : index
    %3 = vector.load %arg2[%c0_1, %c0_2] : memref<4x512xf32, #tpu.memory_space<vmem>>, vector<4x512xf32>
    tpu.vector_store %arg2[%c0_1, %c0_2], %2 {strides = array<i32>} : memref<4x512xf32, #tpu.memory_space<vmem>>, vector<4x512xf32>,
    %cst_3 = arith.constant 2.000000e+00 : f32
    %4 = vector.broadcast %cst_3 : f32 to vector<4x512xf32>
    %5 = arith.subf %0, %4 : vector<4x512xf32>
    %c0_4 = arith.constant 0 : index
    %c0_5 = arith.constant 0 : index
    %6 = vector.load %arg3[%c0_4, %c0_5] : memref<4x512xf32, #tpu.memory_space<vmem>>, vector<4x512xf32>
    tpu.vector_store %arg3[%c0_4, %c0_5], %5 {strides = array<i32>} : memref<4x512xf32, #tpu.memory_space<vmem>>, vector<4x512xf32>,
    %cst_6 = arith.constant 2.000000e+00 : f32
    %7 = vector.broadcast %cst_6 : f32 to vector<4x512xf32>
    %8 = arith.mulf %0, %7 : vector<4x512xf32>
    %c0_7 = arith.constant 0 : index
    %c0_8 = arith.constant 0 : index
    %9 = vector.load %arg4[%c0_7, %c0_8] : memref<4x512xf32, #tpu.memory_space<vmem>>, vector<4x512xf32>
    tpu.vector_store %arg4[%c0_7, %c0_8], %8 {strides = array<i32>} : memref<4x512xf32, #tpu.memory_space<vmem>>, vector<4x512xf32>,
    %cst_9 = arith.constant 5.000000e-01 : f32
    %10 = vector.broadcast %cst_9 : f32 to vector<4x512xf32>
    %11 = arith.mulf %0, %10 : vector<4x512xf32>
    %c0_10 = arith.constant 0 : index
    %c0_11 = arith.constant 0 : index
    %12 = vector.load %arg5[%c0_10, %c0_11] : memref<4x512xf32, #tpu.memory_space<vmem>>, vector<4x512xf32>
    tpu.vector_store %arg5[%c0_10, %c0_11], %11 {strides = array<i32>} : memref<4x512xf32, #tpu.memory_space<vmem>>, vector<4x512xf32>,
    %cst_12 = arith.constant 1.000000e+00 : f32
    %13 = vector.broadcast %cst_12 : f32 to vector<4x512xf32>
    %14 = arith.cmpf ogt, %0, %13 : vector<4x512xf32>
    %c0_13 = arith.constant 0 : index
    %c0_14 = arith.constant 0 : index
    %15 = vector.load %arg6[%c0_13, %c0_14] : memref<4x512xi32, #tpu.memory_space<vmem>>, vector<4x512xi32>
    %16 = arith.extui %14 : vector<4x512xi1> to vector<4x512xi32>
    %cst_15 = arith.constant dense<0> : vector<4x512xi32>
    %17 = arith.cmpi ne, %15, %cst_15 : vector<4x512xi32>
    tpu.vector_store %arg6[%c0_13, %c0_14], %16 {strides = array<i32>} : memref<4x512xi32, #tpu.memory_space<vmem>>, vector<4x512xi32>,
    %cst_16 = arith.constant 1.000000e+00 : f32
    %18 = vector.broadcast %cst_16 : f32 to vector<4x512xf32>
    %19 = arith.cmpf olt, %0, %18 : vector<4x512xf32>
    %c0_17 = arith.constant 0 : index
    %c0_18 = arith.constant 0 : index
    %20 = vector.load %arg7[%c0_17, %c0_18] : memref<4x512xi32, #tpu.memory_space<vmem>>, vector<4x512xi32>
    %21 = arith.extui %19 : vector<4x512xi1> to vector<4x512xi32>
    %cst_19 = arith.constant dense<0> : vector<4x512xi32>
    %22 = arith.cmpi ne, %20, %cst_19 : vector<4x512xi32>
    tpu.vector_store %arg7[%c0_17, %c0_18], %21 {strides = array<i32>} : memref<4x512xi32, #tpu.memory_space<vmem>>, vector<4x512xi32>,
    %cst_20 = arith.constant 1.000000e+00 : f32
    %23 = vector.broadcast %cst_20 : f32 to vector<4x512xf32>
    %24 = arith.cmpf oeq, %0, %23 : vector<4x512xf32>
    %c0_21 = arith.constant 0 : index
    %c0_22 = arith.constant 0 : index
    %25 = vector.load %arg8[%c0_21, %c0_22] : memref<4x512xi32, #tpu.memory_space<vmem>>, vector<4x512xi32>
    %26 = arith.extui %24 : vector<4x512xi1> to vector<4x512xi32>
    %cst_23 = arith.constant dense<0> : vector<4x512xi32>
    %27 = arith.cmpi ne, %25, %cst_23 : vector<4x512xi32>
    tpu.vector_store %arg8[%c0_21, %c0_22], %26 {strides = array<i32>} : memref<4x512xi32, #tpu.memory_space<vmem>>, vector<4x512xi32>,
    return
  }
  func.func @transform_0(%arg0: i32) -> (i32, i32) {
    %c0_i32 = arith.constant 0 : i32
    %c0_i32_0 = arith.constant 0 : i32
    return %arg0, %c0_i32 : i32, i32
  }
  func.func @transform_1(%arg0: i32) -> (i32, i32) {
    %c0_i32 = arith.constant 0 : i32
    %c0_i32_0 = arith.constant 0 : i32
    return %arg0, %c0_i32 : i32, i32
  }
  func.func @transform_2(%arg0: i32) -> (i32, i32) {
    %c0_i32 = arith.constant 0 : i32
    %c0_i32_0 = arith.constant 0 : i32
    return %arg0, %c0_i32 : i32, i32
  }
  func.func @transform_3(%arg0: i32) -> (i32, i32) {
    %c0_i32 = arith.constant 0 : i32
    %c0_i32_0 = arith.constant 0 : i32
    return %arg0, %c0_i32 : i32, i32
  }
  func.func @transform_4(%arg0: i32) -> (i32, i32) {
    %c0_i32 = arith.constant 0 : i32
    %c0_i32_0 = arith.constant 0 : i32
    return %arg0, %c0_i32 : i32, i32
  }
  func.func @transform_5(%arg0: i32) -> (i32, i32) {
    %c0_i32 = arith.constant 0 : i32
    %c0_i32_0 = arith.constant 0 : i32
    return %arg0, %c0_i32 : i32, i32
  }
  func.func @transform_6(%arg0: i32) -> (i32, i32) {
    %c0_i32 = arith.constant 0 : i32
    %c0_i32_0 = arith.constant 0 : i32
    return %arg0, %c0_i32 : i32, i32
  }
  func.func @transform_7(%arg0: i32) -> (i32, i32) {
    %c0_i32 = arith.constant 0 : i32
    %c0_i32_0 = arith.constant 0 : i32
    return %arg0, %c0_i32 : i32, i32
  }
}

module attributes {stable_mosaic.version = 11 : i64} {
  func.func @_elementwise_kernel(%arg0: i32, %arg1: memref<4x512xf32, #tpu.memory_space<vmem>>, %arg2: memref<4x512xf32, #tpu.memory_space<vmem>>, %arg3: memref<4x512xf32, #tpu.memory_space<vmem>>, %arg4: memref<4x512xf32, #tpu.memory_space<vmem>>, %arg5: memref<4x512xf32, #tpu.memory_space<vmem>>, %arg6: memref<4x512xi8, #tpu.memory_space<vmem>>, %arg7: memref<4x512xi8, #tpu.memory_space<vmem>>, %arg8: memref<4x512xi8, #tpu.memory_space<vmem>>) attributes {dimension_semantics = [#tpu.dimension_semantics<parallel>], iteration_bounds = array<i64: 1>, scalar_prefetch = 0 : i64, scratch_operands = 0 : i64, tpu.core_type = #tpu.core_type<tc>, window_params = [{transform_indices = @transform_0, window_bounds = array<i64: 4, 512>}, {transform_indices = @transform_1, window_bounds = array<i64: 4, 512>}, {transform_indices = @transform_2, window_bounds = array<i64: 4, 512>}, {transform_indices = @transform_3, window_bounds = array<i64: 4, 512>}, {transform_indices = @transform_4, window_bounds = array<i64: 4, 512>}, {transform_indices = @transform_5, window_bounds = array<i64: 4, 512>}, {transform_indices = @transform_6, window_bounds = array<i64: 4, 512>}, {transform_indices = @transform_7, window_bounds = array<i64: 4, 512>}]} {
    %c0 = arith.constant 0 : index
    %c0_0 = arith.constant 0 : index
    %0 = vector.load %arg1[%c0, %c0_0] : memref<4x512xf32, #tpu.memory_space<vmem>>, vector<4x512xf32>
    %cst = arith.constant 2.000000e+00 : f32
    %1 = vector.broadcast %cst : f32 to vector<4x512xf32>
    %2 = arith.addf %0, %1 : vector<4x512xf32>
    %c0_1 = arith.constant 0 : index
    %c0_2 = arith.constant 0 : index
    %3 = vector.load %arg2[%c0_1, %c0_2] : memref<4x512xf32, #tpu.memory_space<vmem>>, vector<4x512xf32>
    tpu.vector_store %arg2[%c0_1, %c0_2], %2 {strides = array<i32>} : memref<4x512xf32, #tpu.memory_space<vmem>>, vector<4x512xf32>,
    %cst_3 = arith.constant 2.000000e+00 : f32
    %4 = vector.broadcast %cst_3 : f32 to vector<4x512xf32>
    %5 = arith.subf %0, %4 : vector<4x512xf32>
    %c0_4 = arith.constant 0 : index
    %c0_5 = arith.constant 0 : index
    %6 = vector.load %arg3[%c0_4, %c0_5] : memref<4x512xf32, #tpu.memory_space<vmem>>, vector<4x512xf32>
    tpu.vector_store %arg3[%c0_4, %c0_5], %5 {strides = array<i32>} : memref<4x512xf32, #tpu.memory_space<vmem>>, vector<4x512xf32>,
    %cst_6 = arith.constant 2.000000e+00 : f32
    %7 = vector.broadcast %cst_6 : f32 to vector<4x512xf32>
    %8 = arith.mulf %0, %7 : vector<4x512xf32>
    %c0_7 = arith.constant 0 : index
    %c0_8 = arith.constant 0 : index
    %9 = vector.load %arg4[%c0_7, %c0_8] : memref<4x512xf32, #tpu.memory_space<vmem>>, vector<4x512xf32>
    tpu.vector_store %arg4[%c0_7, %c0_8], %8 {strides = array<i32>} : memref<4x512xf32, #tpu.memory_space<vmem>>, vector<4x512xf32>,
    %cst_9 = arith.constant 5.000000e-01 : f32
    %10 = vector.broadcast %cst_9 : f32 to vector<4x512xf32>
    %11 = arith.mulf %0, %10 : vector<4x512xf32>
    %c0_10 = arith.constant 0 : index
    %c0_11 = arith.constant 0 : index
    %12 = vector.load %arg5[%c0_10, %c0_11] : memref<4x512xf32, #tpu.memory_space<vmem>>, vector<4x512xf32>
    tpu.vector_store %arg5[%c0_10, %c0_11], %11 {strides = array<i32>} : memref<4x512xf32, #tpu.memory_space<vmem>>, vector<4x512xf32>,
    %cst_12 = arith.constant 1.000000e+00 : f32
    %13 = vector.broadcast %cst_12 : f32 to vector<4x512xf32>
    %14 = arith.cmpf ogt, %0, %13 : vector<4x512xf32>
    %15 = arith.extui %14 : vector<4x512xi1> to vector<4x512xi8>
    %c0_13 = arith.constant 0 : index
    %c0_14 = arith.constant 0 : index
    %16 = vector.load %arg6[%c0_13, %c0_14] : memref<4x512xi8, #tpu.memory_space<vmem>>, vector<4x512xi8>
    tpu.vector_store %arg6[%c0_13, %c0_14], %15 {strides = array<i32>} : memref<4x512xi8, #tpu.memory_space<vmem>>, vector<4x512xi8>,
    %cst_15 = arith.constant 1.000000e+00 : f32
    %17 = vector.broadcast %cst_15 : f32 to vector<4x512xf32>
    %18 = arith.cmpf olt, %0, %17 : vector<4x512xf32>
    %19 = arith.extui %18 : vector<4x512xi1> to vector<4x512xi8>
    %c0_16 = arith.constant 0 : index
    %c0_17 = arith.constant 0 : index
    %20 = vector.load %arg7[%c0_16, %c0_17] : memref<4x512xi8, #tpu.memory_space<vmem>>, vector<4x512xi8>
    tpu.vector_store %arg7[%c0_16, %c0_17], %19 {strides = array<i32>} : memref<4x512xi8, #tpu.memory_space<vmem>>, vector<4x512xi8>,
    %cst_18 = arith.constant 1.000000e+00 : f32
    %21 = vector.broadcast %cst_18 : f32 to vector<4x512xf32>
    %22 = arith.cmpf oeq, %0, %21 : vector<4x512xf32>
    %23 = arith.extui %22 : vector<4x512xi1> to vector<4x512xi8>
    %c0_19 = arith.constant 0 : index
    %c0_20 = arith.constant 0 : index
    %24 = vector.load %arg8[%c0_19, %c0_20] : memref<4x512xi8, #tpu.memory_space<vmem>>, vector<4x512xi8>
    tpu.vector_store %arg8[%c0_19, %c0_20], %23 {strides = array<i32>} : memref<4x512xi8, #tpu.memory_space<vmem>>, vector<4x512xi8>,
    return
  }
  func.func @transform_0(%arg0: i32) -> (i32, i32) {
    %c0_i32 = arith.constant 0 : i32
    %c0_i32_0 = arith.constant 0 : i32
    return %arg0, %c0_i32 : i32, i32
  }
  func.func @transform_1(%arg0: i32) -> (i32, i32) {
    %c0_i32 = arith.constant 0 : i32
    %c0_i32_0 = arith.constant 0 : i32
    return %arg0, %c0_i32 : i32, i32
  }
  func.func @transform_2(%arg0: i32) -> (i32, i32) {
    %c0_i32 = arith.constant 0 : i32
    %c0_i32_0 = arith.constant 0 : i32
    return %arg0, %c0_i32 : i32, i32
  }
  func.func @transform_3(%arg0: i32) -> (i32, i32) {
    %c0_i32 = arith.constant 0 : i32
    %c0_i32_0 = arith.constant 0 : i32
    return %arg0, %c0_i32 : i32, i32
  }
  func.func @transform_4(%arg0: i32) -> (i32, i32) {
    %c0_i32 = arith.constant 0 : i32
    %c0_i32_0 = arith.constant 0 : i32
    return %arg0, %c0_i32 : i32, i32
  }
  func.func @transform_5(%arg0: i32) -> (i32, i32) {
    %c0_i32 = arith.constant 0 : i32
    %c0_i32_0 = arith.constant 0 : i32
    return %arg0, %c0_i32 : i32, i32
  }
  func.func @transform_6(%arg0: i32) -> (i32, i32) {
    %c0_i32 = arith.constant 0 : i32
    %c0_i32_0 = arith.constant 0 : i32
    return %arg0, %c0_i32 : i32, i32
  }
  func.func @transform_7(%arg0: i32) -> (i32, i32) {
    %c0_i32 = arith.constant 0 : i32
    %c0_i32_0 = arith.constant 0 : i32
    return %arg0, %c0_i32 : i32, i32
  }
}

</mosaic_0001>

<llo_original>
// kernel: _forward.1
$region0: #{_forward.1}
  #allocation0 [shape = 'u32[]', space=smem, size = 0x4, offset = 0x4, fixed_abs, tag = 'smem constant byte address 0x4 - core index']
  #allocation1 [shape = 'u32[144,128]{1,0:T(1,128)}', space=vmem, size = 0x12000, scoped, tag = 'internal scratch']
  %s0 = inlined_call_operand.vmem [shape: f32[4,512], index: 0, kind: input, shape index: {}]
  %s1 = inlined_call_operand.vmem [shape: f32[4,512], index: 1, kind: output, shape index: {0}]
  %s2 = inlined_call_operand.vmem [shape: f32[4,512], index: 2, kind: output, shape index: {1}]
  %s3 = inlined_call_operand.vmem [shape: f32[4,512], index: 3, kind: output, shape index: {2}]
  %s4 = inlined_call_operand.vmem [shape: f32[4,512], index: 4, kind: output, shape index: {3}]
  %s5 = inlined_call_operand.vmem [shape: s32[4,512], index: 5, kind: output, shape index: {4}]
  %s6 = inlined_call_operand.vmem [shape: s32[4,512], index: 6, kind: output, shape index: {5}]
  %s7 = inlined_call_operand.vmem [shape: s32[4,512], index: 7, kind: output, shape index: {6}]
  %8 = xla_tuple %s1, %s2, %s3, %s4, %s5, %s6, %s7
  %s9 = sld [smem:[#allocation0]]
  $region62: #{_forward.1} parent=0
    _
  %s11 = ssub.s32 1, %s9
  %s12 = scalar_select 0, %s11, %s9
  // Predicated region
  $region2: #{_forward.1} parent=0 // pred_check
    _
  $region3: #{_forward.1} parent=0 // pred_check_branch
    %14 = sbr.rel (0) target = $region5
  $region4: #{_forward.1} parent=0 // pred_region
    _
  $region5: #{_forward.1} parent=0 // pred_fallthru
    _
  %v15 = vld [vmem:[%s0] sm:$0xff]
  %v16 = vld [vmem:[%s0 + $0x8] sm:$0xff]
  %v17 = vadd.f32 %v15, 2.0
  %v18 = vadd.f32 %v16, 2.0
  %19 = vst [vmem:[%s1] sm:$0xff] %v17
  %20 = vst [vmem:[%s1 + $0x8] sm:$0xff] %v18
  %v21 = vsub.f32 %v15, 2.0
  %v22 = vsub.f32 %v16, 2.0
  %23 = vst [vmem:[%s2] sm:$0xff] %v21
  %24 = vst [vmem:[%s2 + $0x8] sm:$0xff] %v22
  %v25 = vmul.f32 %v15, 2.0
  %v26 = vmul.f32 %v16, 2.0
  %27 = vst [vmem:[%s3] sm:$0xff] %v25
  %28 = vst [vmem:[%s3 + $0x8] sm:$0xff] %v26
  %v29 = vmul.f32 %v15, 0.5
  %v30 = vmul.f32 %v16, 0.5
  %31 = vst [vmem:[%s4] sm:$0xff] %v29
  %32 = vst [vmem:[%s4 + $0x8] sm:$0xff] %v30
  %vm33 = vcmp.gt.f32.partialorder %v15, 1.0
  %vm34 = vcmp.gt.f32.partialorder %v16, 1.0
  %v35 = vsel %vm33, 1, 0
  %v36 = vsel %vm34, 1, 0
  %37 = vst [vmem:[%s5] sm:$0xff] %v35
  %38 = vst [vmem:[%s5 + $0x8] sm:$0xff] %v36
  %vm39 = vcmp.lt.f32.partialorder %v15, 1.0
  %vm40 = vcmp.lt.f32.partialorder %v16, 1.0
  %v41 = vsel %vm39, 1, 0
  %v42 = vsel %vm40, 1, 0
  %43 = vst [vmem:[%s6] sm:$0xff] %v41
  %44 = vst [vmem:[%s6 + $0x8] sm:$0xff] %v42
  %vm45 = vcmp.eq.f32.partialorder %v15, 1.0
  %vm46 = vcmp.eq.f32.partialorder %v16, 1.0
  %v47 = vsel %vm45, 1, 0
  %v48 = vsel %vm46, 1, 0
  %49 = vst [vmem:[%s7] sm:$0xff] %v47
  %50 = vst [vmem:[%s7 + $0x8] sm:$0xff] %v48
  // Predicated region
  $region6: #{_forward.1} parent=0 // pred_check
    _
  $region7: #{_forward.1} parent=0 // pred_check_branch
    %52 = sbr.rel (0) target = $region9
  $region8: #{_forward.1} parent=0 // pred_region
    _
  $region9: #{_forward.1} parent=0 // pred_fallthru
    _
  // Predicated region
  $region10: #{_forward.1} parent=0 // pred_check
    _
  $region11: #{_forward.1} parent=0 // pred_check_branch
    %54 = sbr.rel (0) target = $region13
  $region12: #{_forward.1} parent=0 // pred_region
    _
  $region13: #{_forward.1} parent=0 // pred_fallthru
    _
  // Predicated region
  $region14: #{_forward.1} parent=0 // pred_check
    _
  $region15: #{_forward.1} parent=0 // pred_check_branch
    %56 = sbr.rel (0) target = $region17
  $region16: #{_forward.1} parent=0 // pred_region
    _
  $region17: #{_forward.1} parent=0 // pred_fallthru
    _
  // Predicated region
  $region18: #{_forward.1} parent=0 // pred_check
    _
  $region19: #{_forward.1} parent=0 // pred_check_branch
    %58 = sbr.rel (0) target = $region21
  $region20: #{_forward.1} parent=0 // pred_region
    _
  $region21: #{_forward.1} parent=0 // pred_fallthru
    _
  // Predicated region
  $region22: #{_forward.1} parent=0 // pred_check
    _
  $region23: #{_forward.1} parent=0 // pred_check_branch
    %60 = sbr.rel (0) target = $region25
  $region24: #{_forward.1} parent=0 // pred_region
    _
  $region25: #{_forward.1} parent=0 // pred_fallthru
    _
  // Predicated region
  $region26: #{_forward.1} parent=0 // pred_check
    _
  $region27: #{_forward.1} parent=0 // pred_check_branch
    %62 = sbr.rel (0) target = $region29
  $region28: #{_forward.1} parent=0 // pred_region
    _
  $region29: #{_forward.1} parent=0 // pred_fallthru
    _
  // Predicated region
  $region30: #{_forward.1} parent=0 // pred_check
    _
  $region31: #{_forward.1} parent=0 // pred_check_branch
    %64 = sbr.rel (0) target = $region33
  $region32: #{_forward.1} parent=0 // pred_region
    _
  $region33: #{_forward.1} parent=0 // pred_fallthru
    _
  // Predicated region
  $region34: #{_forward.1} parent=0 // pred_check
    _
  $region35: #{_forward.1} parent=0 // pred_check_branch
    %66 = sbr.rel (0) target = $region37
  $region36: #{_forward.1} parent=0 // pred_region
    _
  $region37: #{_forward.1} parent=0 // pred_fallthru
    _
  // Predicated region
  $region38: #{_forward.1} parent=0 // pred_check
    _
  $region39: #{_forward.1} parent=0 // pred_check_branch
    %68 = sbr.rel (0) target = $region41
  $region40: #{_forward.1} parent=0 // pred_region
    _
  $region41: #{_forward.1} parent=0 // pred_fallthru
    _
  // Predicated region
  $region42: #{_forward.1} parent=0 // pred_check
    _
  $region43: #{_forward.1} parent=0 // pred_check_branch
    %70 = sbr.rel (0) target = $region45
  $region44: #{_forward.1} parent=0 // pred_region
    _
  $region45: #{_forward.1} parent=0 // pred_fallthru
    _
  // Predicated region
  $region46: #{_forward.1} parent=0 // pred_check
    _
  $region47: #{_forward.1} parent=0 // pred_check_branch
    %72 = sbr.rel (0) target = $region49
  $region48: #{_forward.1} parent=0 // pred_region
    _
  $region49: #{_forward.1} parent=0 // pred_fallthru
    _
  // Predicated region
  $region50: #{_forward.1} parent=0 // pred_check
    _
  $region51: #{_forward.1} parent=0 // pred_check_branch
    %74 = sbr.rel (0) target = $region53
  $region52: #{_forward.1} parent=0 // pred_region
    _
  $region53: #{_forward.1} parent=0 // pred_fallthru
    _
  // Predicated region
  $region54: #{_forward.1} parent=0 // pred_check
    _
  $region55: #{_forward.1} parent=0 // pred_check_branch
    %76 = sbr.rel (0) target = $region57
  $region56: #{_forward.1} parent=0 // pred_region
    _
  $region57: #{_forward.1} parent=0 // pred_fallthru
    _
  // Predicated region
  $region58: #{_forward.1} parent=0 // pred_check
    _
  $region59: #{_forward.1} parent=0 // pred_check_branch
    %78 = sbr.rel (0) target = $region61
  $region60: #{_forward.1} parent=0 // pred_region
    _
  $region61: #{_forward.1} parent=0 // pred_fallthru
    _

// kernel: _forward.1
$region0: #{_forward.1}
  #allocation0 [shape = 'u32[]', space=smem, size = 0x4, offset = 0x4, fixed_abs, tag = 'smem constant byte address 0x4 - core index']
  #allocation1 [shape = 'u32[144,128]{1,0:T(1,128)}', space=vmem, size = 0x12000, scoped, tag = 'internal scratch']
  %s0 = inlined_call_operand.vmem [shape: f32[4,512], index: 0, kind: input, shape index: {}]
  %s1 = inlined_call_operand.vmem [shape: f32[4,512], index: 1, kind: output, shape index: {0}]
  %s2 = inlined_call_operand.vmem [shape: f32[4,512], index: 2, kind: output, shape index: {1}]
  %s3 = inlined_call_operand.vmem [shape: f32[4,512], index: 3, kind: output, shape index: {2}]
  %s4 = inlined_call_operand.vmem [shape: f32[4,512], index: 4, kind: output, shape index: {3}]
  %s5 = inlined_call_operand.vmem [shape: s8[4,512], index: 5, kind: output, shape index: {4}]
  %s6 = inlined_call_operand.vmem [shape: s8[4,512], index: 6, kind: output, shape index: {5}]
  %s7 = inlined_call_operand.vmem [shape: s8[4,512], index: 7, kind: output, shape index: {6}]
  %8 = xla_tuple %s1, %s2, %s3, %s4, %s5, %s6, %s7
  %s9 = sld [smem:[#allocation0]]
  $region62: #{_forward.1} parent=0
    _
  %s11 = ssub.s32 1, %s9
  %s12 = scalar_select 0, %s11, %s9
  // Predicated region
  $region2: #{_forward.1} parent=0 // pred_check
    _
  $region3: #{_forward.1} parent=0 // pred_check_branch
    %14 = sbr.rel (0) target = $region5
  $region4: #{_forward.1} parent=0 // pred_region
    _
  $region5: #{_forward.1} parent=0 // pred_fallthru
    _
  %v17 = vld [vmem:[%s0] sm:$0xff]
  %v18 = vld [vmem:[%s0 + $0x8] sm:$0xff]
  %v19 = vadd.f32 %v17, 2.0
  %v20 = vadd.f32 %v18, 2.0
  %21 = vst [vmem:[%s1] sm:$0xff] %v19
  %22 = vst [vmem:[%s1 + $0x8] sm:$0xff] %v20
  %v23 = vsub.f32 %v17, 2.0
  %v24 = vsub.f32 %v18, 2.0
  %25 = vst [vmem:[%s2] sm:$0xff] %v23
  %26 = vst [vmem:[%s2 + $0x8] sm:$0xff] %v24
  %v27 = vmul.f32 %v17, 2.0
  %v28 = vmul.f32 %v18, 2.0
  %29 = vst [vmem:[%s3] sm:$0xff] %v27
  %30 = vst [vmem:[%s3 + $0x8] sm:$0xff] %v28
  %v31 = vmul.f32 %v17, 0.5
  %v32 = vmul.f32 %v18, 0.5
  %33 = vst [vmem:[%s4] sm:$0xff] %v31
  %34 = vst [vmem:[%s4 + $0x8] sm:$0xff] %v32
  %vm35 = vcmp.gt.f32.partialorder %v17, 1.0
  %vm36 = vcmp.gt.f32.partialorder %v18, 1.0
  %v37 = vsel %vm35, 1, 0
  %v38 = vsel %vm36, 1, 0
  %v39 = vpack.c.b16 %v38, %v37
  %v40 = vpack.c.b8 %v39, %v39
  %vm41 = vnez %v40
  %v42 = vsel %vm41, 16843009, 0
  %v44 = vunpack.c.l.s4 1966171168
  %v45 = vunpack.c.0.s8 %v44
  %v46 = vlaneseq
  %v47 = vshrl.u32 %v46, 7
  %v48 = vsub.s32 %v45, %v47
  %v49 = vrot.slane %v42, %v48
  %v50 = vcombine.high %v49, %v49
  %v52 = vunpack.c.l.s4 1966171168
  %v53 = vunpack.c.0.s8 %v52
  %v54 = vlaneseq
  %v55 = vshrl.u32 %v54, 7
  %v56 = vsub.s32 %v53, %v55
  %v57 = vrot.slane %v49, %v56
  %v59 = vunpack.c.l.s4 1966171168
  %v60 = vunpack.c.0.s8 %v59
  %v61 = vlaneseq
  %v62 = vshrl.u32 %v61, 7
  %v63 = vsub.s32 %v60, %v62
  %v64 = vrot.slane %v50, %v63
  %v65 = vcombine.high %v57, %v57
  %v66 = vcombine.high %v64, %v64
  %vm67 = vnez %v57
  %vm68 = vnez %v64
  %vm69 = vnez %v65
  %vm70 = vnez %v66
  %v71 = vsel %vm67, 16843009, 0
  %v72 = vsel %vm68, 16843009, 0
  %v73 = vsel %vm69, 16843009, 0
  %v74 = vsel %vm70, 16843009, 0
  %v75 = vcombine.low %v71, %v72
  %v76 = vcombine.low %v73, %v74
  %v78 = vunpack.c.l.s4 1966171168
  %v79 = vunpack.c.0.s8 %v78
  %v80 = vlaneseq
  %v81 = vshrl.u32 %v80, 7
  %v82 = vsub.s32 %v79, %v81
  %v83 = vrot.slane %v75, %v82
  %v85 = vunpack.c.l.s4 1966171168
  %v86 = vunpack.c.0.s8 %v85
  %v87 = vlaneseq
  %v88 = vshrl.u32 %v87, 7
  %v89 = vsub.s32 %v86, %v88
  %v90 = vrot.slane %v76, %v89
  %v91 = vcombine.low %v83, %v90
  %v93 = vunpack.c.l.s4 1966171168
  %v94 = vunpack.c.0.s8 %v93
  %v95 = vlaneseq
  %v96 = vshrl.u32 %v95, 7
  %v97 = vsub.s32 %v94, %v96
  %v98 = vrot.slane %v91, %v97
  %99 = vst [vmem:[%s5] sm:$0xf] %v98
  %vm100 = vcmp.lt.f32.partialorder %v17, 1.0
  %vm101 = vcmp.lt.f32.partialorder %v18, 1.0
  %v102 = vsel %vm100, 1, 0
  %v103 = vsel %vm101, 1, 0
  %v104 = vpack.c.b16 %v103, %v102
  %v105 = vpack.c.b8 %v104, %v104
  %vm106 = vnez %v105
  %v107 = vsel %vm106, 16843009, 0
  %v109 = vunpack.c.l.s4 1966171168
  %v110 = vunpack.c.0.s8 %v109
  %v111 = vlaneseq
  %v112 = vshrl.u32 %v111, 7
  %v113 = vsub.s32 %v110, %v112
  %v114 = vrot.slane %v107, %v113
  %v115 = vcombine.high %v114, %v114
  %v117 = vunpack.c.l.s4 1966171168
  %v118 = vunpack.c.0.s8 %v117
  %v119 = vlaneseq
  %v120 = vshrl.u32 %v119, 7
  %v121 = vsub.s32 %v118, %v120
  %v122 = vrot.slane %v114, %v121
  %v124 = vunpack.c.l.s4 1966171168
  %v125 = vunpack.c.0.s8 %v124
  %v126 = vlaneseq
  %v127 = vshrl.u32 %v126, 7
  %v128 = vsub.s32 %v125, %v127
  %v129 = vrot.slane %v115, %v128
  %v130 = vcombine.high %v122, %v122
  %v131 = vcombine.high %v129, %v129
  %vm132 = vnez %v122
  %vm133 = vnez %v129
  %vm134 = vnez %v130
  %vm135 = vnez %v131
  %v136 = vsel %vm132, 16843009, 0
  %v137 = vsel %vm133, 16843009, 0
  %v138 = vsel %vm134, 16843009, 0
  %v139 = vsel %vm135, 16843009, 0
  %v140 = vcombine.low %v136, %v137
  %v141 = vcombine.low %v138, %v139
  %v143 = vunpack.c.l.s4 1966171168
  %v144 = vunpack.c.0.s8 %v143
  %v145 = vlaneseq
  %v146 = vshrl.u32 %v145, 7
  %v147 = vsub.s32 %v144, %v146
  %v148 = vrot.slane %v140, %v147
  %v150 = vunpack.c.l.s4 1966171168
  %v151 = vunpack.c.0.s8 %v150
  %v152 = vlaneseq
  %v153 = vshrl.u32 %v152, 7
  %v154 = vsub.s32 %v151, %v153
  %v155 = vrot.slane %v141, %v154
  %v156 = vcombine.low %v148, %v155
  %v158 = vunpack.c.l.s4 1966171168
  %v159 = vunpack.c.0.s8 %v158
  %v160 = vlaneseq
  %v161 = vshrl.u32 %v160, 7
  %v162 = vsub.s32 %v159, %v161
  %v163 = vrot.slane %v156, %v162
  %164 = vst [vmem:[%s6] sm:$0xf] %v163
  %vm165 = vcmp.eq.f32.partialorder %v17, 1.0
  %vm166 = vcmp.eq.f32.partialorder %v18, 1.0
  %v167 = vsel %vm165, 1, 0
  %v168 = vsel %vm166, 1, 0
  %v169 = vpack.c.b16 %v168, %v167
  %v170 = vpack.c.b8 %v169, %v169
  %vm171 = vnez %v170
  %v172 = vsel %vm171, 16843009, 0
  %v174 = vunpack.c.l.s4 1966171168
  %v175 = vunpack.c.0.s8 %v174
  %v176 = vlaneseq
  %v177 = vshrl.u32 %v176, 7
  %v178 = vsub.s32 %v175, %v177
  %v179 = vrot.slane %v172, %v178
  %v180 = vcombine.high %v179, %v179
  %v182 = vunpack.c.l.s4 1966171168
  %v183 = vunpack.c.0.s8 %v182
  %v184 = vlaneseq
  %v185 = vshrl.u32 %v184, 7
  %v186 = vsub.s32 %v183, %v185
  %v187 = vrot.slane %v179, %v186
  %v189 = vunpack.c.l.s4 1966171168
  %v190 = vunpack.c.0.s8 %v189
  %v191 = vlaneseq
  %v192 = vshrl.u32 %v191, 7
  %v193 = vsub.s32 %v190, %v192
  %v194 = vrot.slane %v180, %v193
  %v195 = vcombine.high %v187, %v187
  %v196 = vcombine.high %v194, %v194
  %vm197 = vnez %v187
  %vm198 = vnez %v194
  %vm199 = vnez %v195
  %vm200 = vnez %v196
  %v201 = vsel %vm197, 16843009, 0
  %v202 = vsel %vm198, 16843009, 0
  %v203 = vsel %vm199, 16843009, 0
  %v204 = vsel %vm200, 16843009, 0
  %v205 = vcombine.low %v201, %v202
  %v206 = vcombine.low %v203, %v204
  %v208 = vunpack.c.l.s4 1966171168
  %v209 = vunpack.c.0.s8 %v208
  %v210 = vlaneseq
  %v211 = vshrl.u32 %v210, 7
  %v212 = vsub.s32 %v209, %v211
  %v213 = vrot.slane %v205, %v212
  %v215 = vunpack.c.l.s4 1966171168
  %v216 = vunpack.c.0.s8 %v215
  %v217 = vlaneseq
  %v218 = vshrl.u32 %v217, 7
  %v219 = vsub.s32 %v216, %v218
  %v220 = vrot.slane %v206, %v219
  %v221 = vcombine.low %v213, %v220
  %v223 = vunpack.c.l.s4 1966171168
  %v224 = vunpack.c.0.s8 %v223
  %v225 = vlaneseq
  %v226 = vshrl.u32 %v225, 7
  %v227 = vsub.s32 %v224, %v226
  %v228 = vrot.slane %v221, %v227
  %229 = vst [vmem:[%s7] sm:$0xf] %v228
  // Predicated region
  $region6: #{_forward.1} parent=0 // pred_check
    _
  $region7: #{_forward.1} parent=0 // pred_check_branch
    %231 = sbr.rel (0) target = $region9
  $region8: #{_forward.1} parent=0 // pred_region
    _
  $region9: #{_forward.1} parent=0 // pred_fallthru
    _
  // Predicated region
  $region10: #{_forward.1} parent=0 // pred_check
    _
  $region11: #{_forward.1} parent=0 // pred_check_branch
    %233 = sbr.rel (0) target = $region13
  $region12: #{_forward.1} parent=0 // pred_region
    _
  $region13: #{_forward.1} parent=0 // pred_fallthru
    _
  // Predicated region
  $region14: #{_forward.1} parent=0 // pred_check
    _
  $region15: #{_forward.1} parent=0 // pred_check_branch
    %235 = sbr.rel (0) target = $region17
  $region16: #{_forward.1} parent=0 // pred_region
    _
  $region17: #{_forward.1} parent=0 // pred_fallthru
    _
  // Predicated region
  $region18: #{_forward.1} parent=0 // pred_check
    _
  $region19: #{_forward.1} parent=0 // pred_check_branch
    %237 = sbr.rel (0) target = $region21
  $region20: #{_forward.1} parent=0 // pred_region
    _
  $region21: #{_forward.1} parent=0 // pred_fallthru
    _
  // Predicated region
  $region22: #{_forward.1} parent=0 // pred_check
    _
  $region23: #{_forward.1} parent=0 // pred_check_branch
    %239 = sbr.rel (0) target = $region25
  $region24: #{_forward.1} parent=0 // pred_region
    _
  $region25: #{_forward.1} parent=0 // pred_fallthru
    _
  // Predicated region
  $region26: #{_forward.1} parent=0 // pred_check
    _
  $region27: #{_forward.1} parent=0 // pred_check_branch
    %241 = sbr.rel (0) target = $region29
  $region28: #{_forward.1} parent=0 // pred_region
    _
  $region29: #{_forward.1} parent=0 // pred_fallthru
    _
  // Predicated region
  $region30: #{_forward.1} parent=0 // pred_check
    _
  $region31: #{_forward.1} parent=0 // pred_check_branch
    %243 = sbr.rel (0) target = $region33
  $region32: #{_forward.1} parent=0 // pred_region
    _
  $region33: #{_forward.1} parent=0 // pred_fallthru
    _
  // Predicated region
  $region34: #{_forward.1} parent=0 // pred_check
    _
  $region35: #{_forward.1} parent=0 // pred_check_branch
    %245 = sbr.rel (0) target = $region37
  $region36: #{_forward.1} parent=0 // pred_region
    _
  $region37: #{_forward.1} parent=0 // pred_fallthru
    _
  // Predicated region
  $region38: #{_forward.1} parent=0 // pred_check
    _
  $region39: #{_forward.1} parent=0 // pred_check_branch
    %247 = sbr.rel (0) target = $region41
  $region40: #{_forward.1} parent=0 // pred_region
    _
  $region41: #{_forward.1} parent=0 // pred_fallthru
    _
  // Predicated region
  $region42: #{_forward.1} parent=0 // pred_check
    _
  $region43: #{_forward.1} parent=0 // pred_check_branch
    %249 = sbr.rel (0) target = $region45
  $region44: #{_forward.1} parent=0 // pred_region
    _
  $region45: #{_forward.1} parent=0 // pred_fallthru
    _
  // Predicated region
  $region46: #{_forward.1} parent=0 // pred_check
    _
  $region47: #{_forward.1} parent=0 // pred_check_branch
    %251 = sbr.rel (0) target = $region49
  $region48: #{_forward.1} parent=0 // pred_region
    _
  $region49: #{_forward.1} parent=0 // pred_fallthru
    _
  // Predicated region
  $region50: #{_forward.1} parent=0 // pred_check
    _
  $region51: #{_forward.1} parent=0 // pred_check_branch
    %253 = sbr.rel (0) target = $region53
  $region52: #{_forward.1} parent=0 // pred_region
    _
  $region53: #{_forward.1} parent=0 // pred_fallthru
    _
  // Predicated region
  $region54: #{_forward.1} parent=0 // pred_check
    _
  $region55: #{_forward.1} parent=0 // pred_check_branch
    %255 = sbr.rel (0) target = $region57
  $region56: #{_forward.1} parent=0 // pred_region
    _
  $region57: #{_forward.1} parent=0 // pred_fallthru
    _
  // Predicated region
  $region58: #{_forward.1} parent=0 // pred_check
    _
  $region59: #{_forward.1} parent=0 // pred_check_branch
    %257 = sbr.rel (0) target = $region61
  $region60: #{_forward.1} parent=0 // pred_region
    _
  $region61: #{_forward.1} parent=0 // pred_fallthru
    _

</llo_original>
